<compile_context>
chip_gen: v6e
topology: v6e:2x2x1
jax: 0.10.0
libtpu: 0.0.40
codegen_flags: <defaults>
</compile_context>

<pallas_src>
import jax
import jax.numpy as jnp
from jax.experimental import pallas as pl
from jax.experimental.pallas import tpu as pltpu


# ----------------------------- Pallas kernel --------------------------------

def _s3_affine_kernel(m_ref, beta_ref, x_ref, o_ref):
    # m_ref    : SMEM (N, N) f32 -- composed segment-mixing matrix
    # beta_ref : SMEM (N,)   f32 -- composed per-segment bias
    # x_ref    : VMEM (TB, N, TR, L) -- all N segments of this (batch,row) tile
    # o_ref    : VMEM (TB, N, TR, L)
    num_seg = x_ref.shape[1]
    # TODO(synk): for large N switch the dense N^2 VPU accumulation below to an
    # MXU matmul over the segment axis; for the small N used by S3 this loop is
    # far below the HBM-bandwidth compute budget.
    for n in range(num_seg):
        acc = x_ref[:, 0] * m_ref[n, 0]
        for m in range(1, num_seg):
            acc = acc + x_ref[:, m] * m_ref[n, m]
        o_ref[:, n] = (acc + beta_ref[n]).astype(o_ref.dtype)


# ----------------------------- tiling helpers --------------------------------

def _pad8(v):
    return -(-v // 8) * 8


def _pad128(v):
    return -(-v // 128) * 128


def _largest_divisor_leq(n, cap, multiple_of=1):
    for d in range(min(n, cap), 0, -1):
        if n % d == 0 and d % multiple_of == 0:
            return d
    return None


def _vmem_budget():
    """(vmem_limit_bytes, max_padded_block_bytes) derived from the chip."""
    try:
        cap = int(pltpu.get_tpu_info().vmem_capacity_bytes)
    except Exception:
        cap = 64 * 1024 * 1024
    vmem_limit = int(min(cap // 2, 64 * 1024 * 1024))
    # 2 specs x 2 pipeline buffers + headroom for in-kernel temporaries.
    max_block = max(64 * 1024, vmem_limit // 8)
    return vmem_limit, max_block


def _choose_rl(SC, lane_cap=1024):
    """Factor the per-segment payload SC = R*L minimising (8,128) padding.

    Ties are broken towards larger L (lane-dense stores were the biggest
    measured lever)."""
    best_key, best = None, (SC, 1)
    for L in range(1, min(SC, lane_cap) + 1):
        if SC % L:
            continue
        R = SC // L
        key = (_pad8(R) * _pad128(L), -L)
        if best_key is None or key < best_key:
            best_key, best = key, (R, L)
    return best


def _choose_tiles(B, N, R, L, itemsize, max_block_bytes):
    """Pick (TB, TR): exact divisors of (B, R), budgeted on PADDED block bytes."""
    lpad = _pad128(L)

    def padded_bytes(tb, tr):
        return tb * N * _pad8(tr) * lpad * itemsize

    if padded_bytes(B, R) <= max_block_bytes:
        return B, R
    if padded_bytes(1, R) <= max_block_bytes:
        cap_tb = max_block_bytes // padded_bytes(1, R)
        tb = _largest_divisor_leq(B, max(1, cap_tb))
        return (tb if tb else 1), R
    # Split the row (sublane) axis: TR must be a multiple of 8 or equal R.
    cap_rows = max_block_bytes // (N * lpad * itemsize)
    cap_rows = max(8, (cap_rows // 8) * 8)
    tr = _largest_divisor_leq(R, cap_rows, multiple_of=8)
    if tr is None:
        # No 8-aligned divisor: fall back to the full row extent (vmem_limit
        # has enough headroom for the small shapes where this can happen).
        tr = R
    return 1, tr


# ----------------------------- composed-run apply -----------------------------

def build_result_matrix(shuffle_vector):
    """0/1 shuffle matrix P, faithful to the torch code."""
    if shuffle_vector.ndim > 1:
        sv_sum = shuffle_vector.sum(axis=tuple(range(shuffle_vector.ndim - 1)))
    else:
        sv_sum = shuffle_vector
    n = sv_sum.shape[0]
    desc_idx = jnp.argsort(-sv_sum)
    result = jnp.zeros((n, n), jnp.float32).at[jnp.arange(n), desc_idx].set(sv_sum)
    return jnp.where(result != 0, 1.0, 0.0)


def _compose_run(run_layers, N):
    """Compose a run of equal-N layers into one (N,N) matrix + (N,) bias."""
    eye = jnp.eye(N, dtype=jnp.float32)
    mat = eye
    beta = jnp.zeros((N,), jnp.float32)
    for layer in run_layers:
        P = build_result_matrix(layer['shuffle_vector'])
        m_l = layer['w0'] * P + layer['w1'] * eye
        mat = m_l @ mat
        beta = m_l @ beta + layer['bias']
    return mat, beta


def _apply_segment_affine(x, num_segments, mat, beta):
    """One Pallas pass: out_seg[n] = sum_m mat[n,m]*x_seg[m] + beta[n]."""
    B, T, C = x.shape
    N = num_segments
    S = T // N
    SC = S * C
    R, L = _choose_rl(SC)
    itemsize = jnp.dtype(x.dtype).itemsize
    vmem_limit, max_block = _vmem_budget()
    TB, TR = _choose_tiles(B, N, R, L, itemsize, max_block)

    xv = x.reshape(B, N, R, L)          # free, contiguous reshape
    grid = (B // TB, R // TR)

    out = pl.pallas_call(
        _s3_affine_kernel,
        out_shape=jax.ShapeDtypeStruct((B, N, R, L), x.dtype),
        grid_spec=pltpu.PrefetchScalarGridSpec(
            num_scalar_prefetch=2,       # mat (N,N) f32, beta (N,) f32 -> SMEM
            grid=grid,
            in_specs=[
                # One resident slab with ALL N segments of the current tile.
                pl.BlockSpec((TB, N, TR, L),
                             lambda b, r, mat_r, beta_r: (b, 0, r, 0)),
            ],
            out_specs=pl.BlockSpec((TB, N, TR, L),
                                   lambda b, r, mat_r, beta_r: (b, 0, r, 0)),
        ),
        compiler_params=pltpu.CompilerParams(
            dimension_semantics=("parallel", "parallel"),
            vmem_limit_bytes=vmem_limit,
        ),
    )(mat.astype(jnp.float32), beta.astype(jnp.float32), xv)

    return out.reshape(B, T, C)


# --------------------------- parameter construction ---------------------------

def init_s3_params(key, num_layers, initial_num_segments, shuffle_vector_dim=1,
                   segment_multiplier=1, use_conv_w_avg=True,
                   initialization_type='kaiming', use_stitch=True):
    """Deterministic re-implementation of the module __init__ (synthetic params)."""
    layers = []
    nseg = int(initial_num_segments)
    for _ in range(num_layers):
        key, k1, k2, k3 = jax.random.split(key, 4)
        shape = (nseg,) * shuffle_vector_dim
        if initialization_type == 'kaiming' and shuffle_vector_dim > 1:
            fan_out = shape[0]
            std = (2.0 / fan_out) ** 0.5          # kaiming_normal_, fan_out, relu
            sv = jax.random.normal(k1, shape, jnp.float32) * std * 0.001 + 0.01
        else:
            sv = jnp.full(shape, 0.1, jnp.float32) + 0.5
        if not use_stitch:
            w0, w1, bias = 1.0, 0.0, 0.0
        elif use_conv_w_avg:
            # Conv1d(2, 1, 1) default init: U(-1/sqrt(fan_in), 1/sqrt(fan_in)), fan_in=2
            bound = 1.0 / (2.0 ** 0.5)
            wgt = jax.random.uniform(k2, (2,), jnp.float32, -bound, bound)
            b = jax.random.uniform(k3, (1,), jnp.float32, -bound, bound)
            w0, w1, bias = float(wgt[0]), float(wgt[1]), float(b[0])
        else:
            ws = jax.nn.softmax(jnp.array([0.5, 0.5], jnp.float32))
            w0, w1, bias = float(ws[0]), float(ws[1]), 0.0
        layers.append(dict(num_segments=nseg, shuffle_vector=sv,
                           w0=w0, w1=w1, bias=bias))
        nseg = int(nseg * segment_multiplier)
        if nseg == 0:
            nseg = 1
    return layers


# ------------------------------- forward pass ---------------------------------

def s3_forward(x, layers):
    """S3 stack forward: one Pallas pass per run of equal-num_segments layers."""
    x_copy = x
    i = 0
    num_layers = len(layers)
    while i < num_layers:
        n = layers[i]['num_segments']
        if x_copy.shape[1] < n:
            i += 1
            continue
        trunc = x_copy.shape[1] % n
        if trunc > 0:
            x_copy = x_copy[:, trunc:, :]
        # Extend the run over consecutive layers with the same num_segments
        # (T stays fixed and divisible by n, so they compose exactly).
        j = i
        while j < num_layers and layers[j]['num_segments'] == n:
            j += 1
        mat, beta = _compose_run(layers[i:j], n)
        x_copy = _apply_segment_affine(x_copy, n, mat, beta)
        i = j
    if x.shape[1] > x_copy.shape[1]:
        x_copy = jnp.concatenate(
            [x[:, :x.shape[1] - x_copy.shape[1], :], x_copy], axis=1)
    return x_copy


# ----------------------------- pure-JAX reference ----------------------------

def _s3_layer_ref(x, num_segments, P, w0, w1, bias):
    B, T, C = x.shape
    S = T // num_segments
    segs = x.reshape(B, num_segments, S, C)
    shuffled = jnp.einsum('ab,nbsc->nasc', P, segs).reshape(B, T, C)
    return w0 * shuffled + w1 * x + bias


def s3_forward_ref(x, layers):
    x_copy = x
    for layer in layers:
        n = layer['num_segments']
        if x_copy.shape[1] >= n:
            trunc = x_copy.shape[1] % n
            if trunc > 0:
                x_copy = x_copy[:, trunc:, :]
            P = build_result_matrix(layer['shuffle_vector'])
            x_copy = _s3_layer_ref(x_copy, n, P,
                                   layer['w0'], layer['w1'], layer['bias'])
    if x.shape[1] > x_copy.shape[1]:
        x_copy = jnp.concatenate(
            [x[:, :x.shape[1] - x_copy.shape[1], :], x_copy], axis=1)
    return x_copy


# ---------------------------------- main --------------------------------------

if __name__ == "__main__":
    key = jax.random.PRNGKey(0)
    kx1, kp1, kx2, kp2, kx3, kp3 = jax.random.split(key, 6)

    # Case 1: T % num_segments != 0 (truncation + re-concat), equal-N layers
    #         compose into one pass; S*C % 128 == 0 -> lane-dense layout.
    B, T, C = 2, 18, 32
    x1 = jax.random.normal(kx1, (B, T, C), jnp.float32)
    layers1 = init_s3_params(kp1, num_layers=2, initial_num_segments=4,
                             shuffle_vector_dim=2, segment_multiplier=1,
                             use_conv_w_avg=True, initialization_type='kaiming',
                             use_stitch=True)
    out1 = jax.block_until_ready(s3_forward(x1, layers1))
    ref1 = s3_forward_ref(x1, layers1)
    assert out1.shape == x1.shape, (out1.shape, x1.shape)
    assert jnp.allclose(out1, ref1, atol=1e-5, rtol=1e-5), \
        float(jnp.max(jnp.abs(out1 - ref1)))

    # Case 2: S*C % 128 != 0 -> densest (R, L) factorization fallback.
    B2, T2, C2 = 2, 20, 24
    x2 = jax.random.normal(kx2, (B2, T2, C2), jnp.float32)
    layers2 = init_s3_params(kp2, num_layers=2, initial_num_segments=5,
                             shuffle_vector_dim=2, segment_multiplier=1,
                             use_conv_w_avg=True, initialization_type='kaiming',
                             use_stitch=True)
    out2 = jax.block_until_ready(s3_forward(x2, layers2))
    ref2 = s3_forward_ref(x2, layers2)
    assert out2.shape == x2.shape, (out2.shape, x2.shape)
    assert jnp.allclose(out2, ref2, atol=1e-5, rtol=1e-5), \
        float(jnp.max(jnp.abs(out2 - ref2)))

    # Case 3: segment_multiplier=2 -> three distinct-N runs (no composition),
    #         exercises per-run truncation and the final leading re-concat.
    B3, T3, C3 = 2, 35, 16
    x3 = jax.random.normal(kx3, (B3, T3, C3), jnp.float32)
    layers3 = init_s3_params(kp3, num_layers=3, initial_num_segments=4,
                             shuffle_vector_dim=2, segment_multiplier=2,
                             use_conv_w_avg=True, initialization_type='kaiming',
                             use_stitch=True)
    out3 = jax.block_until_ready(s3_forward(x3, layers3))
    ref3 = s3_forward_ref(x3, layers3)
    assert out3.shape == x3.shape, (out3.shape, x3.shape)
    assert jnp.allclose(out3, ref3, atol=1e-5, rtol=1e-5), \
        float(jnp.max(jnp.abs(out3 - ref3)))

    print("KERNEL_OK")
</pallas_src>

<mosaic_0001>
module attributes {stable_mosaic.version = 11 : i64} {
  func.func @_s3_affine_kernel(%arg0: i32, %arg1: i32, %arg2: memref<4x4xf32, #tpu.memory_space<smem>>, %arg3: memref<4xf32, #tpu.memory_space<smem>>, %arg4: memref<2x4x1x128xf32, #tpu.memory_space<vmem>>, %arg5: memref<2x4x1x128xf32, #tpu.memory_space<vmem>>) attributes {dimension_semantics = [#tpu.dimension_semantics<parallel>, #tpu.dimension_semantics<parallel>], iteration_bounds = array<i64: 1, 1>, scalar_prefetch = 2 : i64, scratch_operands = 0 : i64, tpu.core_type = #tpu.core_type<tc>, window_params = [{transform_indices = @transform_0, window_bounds = array<i64: 2, 4, 1, 128>}, {transform_indices = @transform_1, window_bounds = array<i64: 2, 4, 1, 128>}]} {
    %c0 = arith.constant 0 : index
    %c0_0 = arith.constant 0 : index
    %c0_1 = arith.constant 0 : index
    %c0_2 = arith.constant 0 : index
    %0 = vector.load %arg4[%c0, %c0_0, %c0_1, %c0_2] : memref<2x4x1x128xf32, #tpu.memory_space<vmem>>, vector<2x1x1x128xf32>
    %1 = vector.shape_cast %0 : vector<2x1x1x128xf32> to vector<2x1x128xf32>
    %c0_3 = arith.constant 0 : index
    %c0_4 = arith.constant 0 : index
    %2 = memref.load %arg2[%c0_3, %c0_4] : memref<4x4xf32, #tpu.memory_space<smem>>
    %3 = vector.broadcast %2 : f32 to vector<2x1x128xf32>
    %4 = arith.mulf %1, %3 : vector<2x1x128xf32>
    %c0_5 = arith.constant 0 : index
    %c1 = arith.constant 1 : index
    %c0_6 = arith.constant 0 : index
    %c0_7 = arith.constant 0 : index
    %5 = vector.load %arg4[%c0_5, %c1, %c0_6, %c0_7] : memref<2x4x1x128xf32, #tpu.memory_space<vmem>>, vector<2x1x1x128xf32>
    %6 = vector.shape_cast %5 : vector<2x1x1x128xf32> to vector<2x1x128xf32>
    %c0_8 = arith.constant 0 : index
    %c1_9 = arith.constant 1 : index
    %7 = memref.load %arg2[%c0_8, %c1_9] : memref<4x4xf32, #tpu.memory_space<smem>>
    %8 = vector.broadcast %7 : f32 to vector<2x1x128xf32>
    %9 = arith.mulf %6, %8 : vector<2x1x128xf32>
    %10 = arith.addf %4, %9 : vector<2x1x128xf32>
    %c0_10 = arith.constant 0 : index
    %c2 = arith.constant 2 : index
    %c0_11 = arith.constant 0 : index
    %c0_12 = arith.constant 0 : index
    %11 = vector.load %arg4[%c0_10, %c2, %c0_11, %c0_12] : memref<2x4x1x128xf32, #tpu.memory_space<vmem>>, vector<2x1x1x128xf32>
    %12 = vector.shape_cast %11 : vector<2x1x1x128xf32> to vector<2x1x128xf32>
    %c0_13 = arith.constant 0 : index
    %c2_14 = arith.constant 2 : index
    %13 = memref.load %arg2[%c0_13, %c2_14] : memref<4x4xf32, #tpu.memory_space<smem>>
    %14 = vector.broadcast %13 : f32 to vector<2x1x128xf32>
    %15 = arith.mulf %12, %14 : vector<2x1x128xf32>
    %16 = arith.addf %10, %15 : vector<2x1x128xf32>
    %c0_15 = arith.constant 0 : index
    %c3 = arith.constant 3 : index
    %c0_16 = arith.constant 0 : index
    %c0_17 = arith.constant 0 : index
    %17 = vector.load %arg4[%c0_15, %c3, %c0_16, %c0_17] : memref<2x4x1x128xf32, #tpu.memory_space<vmem>>, vector<2x1x1x128xf32>
    %18 = vector.shape_cast %17 : vector<2x1x1x128xf32> to vector<2x1x128xf32>
    %c0_18 = arith.constant 0 : index
    %c3_19 = arith.constant 3 : index
    %19 = memref.load %arg2[%c0_18, %c3_19] : memref<4x4xf32, #tpu.memory_space<smem>>
    %20 = vector.broadcast %19 : f32 to vector<2x1x128xf32>
    %21 = arith.mulf %18, %20 : vector<2x1x128xf32>
    %22 = arith.addf %16, %21 : vector<2x1x128xf32>
    %c0_20 = arith.constant 0 : index
    %23 = memref.load %arg3[%c0_20] : memref<4xf32, #tpu.memory_space<smem>>
    %24 = vector.broadcast %23 : f32 to vector<2x1x128xf32>
    %25 = arith.addf %22, %24 : vector<2x1x128xf32>
    %c0_21 = arith.constant 0 : index
    %c0_22 = arith.constant 0 : index
    %c0_23 = arith.constant 0 : index
    %c0_24 = arith.constant 0 : index
    %26 = vector.load %arg5[%c0_21, %c0_22, %c0_23, %c0_24] : memref<2x4x1x128xf32, #tpu.memory_space<vmem>>, vector<2x1x1x128xf32>
    %27 = vector.shape_cast %26 : vector<2x1x1x128xf32> to vector<2x1x128xf32>
    %28 = vector.shape_cast %25 : vector<2x1x128xf32> to vector<2x1x1x128xf32>
    tpu.vector_store %arg5[%c0_21, %c0_22, %c0_23, %c0_24], %28 {strides = array<i32>} : memref<2x4x1x128xf32, #tpu.memory_space<vmem>>, vector<2x1x1x128xf32>,
    %c0_25 = arith.constant 0 : index
    %c0_26 = arith.constant 0 : index
    %c0_27 = arith.constant 0 : index
    %c0_28 = arith.constant 0 : index
    %29 = vector.load %arg4[%c0_25, %c0_26, %c0_27, %c0_28] : memref<2x4x1x128xf32, #tpu.memory_space<vmem>>, vector<2x1x1x128xf32>
    %30 = vector.shape_cast %29 : vector<2x1x1x128xf32> to vector<2x1x128xf32>
    %c1_29 = arith.constant 1 : index
    %c0_30 = arith.constant 0 : index
    %31 = memref.load %arg2[%c1_29, %c0_30] : memref<4x4xf32, #tpu.memory_space<smem>>
    %32 = vector.broadcast %31 : f32 to vector<2x1x128xf32>
    %33 = arith.mulf %30, %32 : vector<2x1x128xf32>
    %c0_31 = arith.constant 0 : index
    %c1_32 = arith.constant 1 : index
    %c0_33 = arith.constant 0 : index
    %c0_34 = arith.constant 0 : index
    %34 = vector.load %arg4[%c0_31, %c1_32, %c0_33, %c0_34] : memref<2x4x1x128xf32, #tpu.memory_space<vmem>>, vector<2x1x1x128xf32>
    %35 = vector.shape_cast %34 : vector<2x1x1x128xf32> to vector<2x1x128xf32>
    %c1_35 = arith.constant 1 : index
    %c1_36 = arith.constant 1 : index
    %36 = memref.load %arg2[%c1_35, %c1_36] : memref<4x4xf32, #tpu.memory_space<smem>>
    %37 = vector.broadcast %36 : f32 to vector<2x1x128xf32>
    %38 = arith.mulf %35, %37 : vector<2x1x128xf32>
    %39 = arith.addf %33, %38 : vector<2x1x128xf32>
    %c0_37 = arith.constant 0 : index
    %c2_38 = arith.constant 2 : index
    %c0_39 = arith.constant 0 : index
    %c0_40 = arith.constant 0 : index
    %40 = vector.load %arg4[%c0_37, %c2_38, %c0_39, %c0_40] : memref<2x4x1x128xf32, #tpu.memory_space<vmem>>, vector<2x1x1x128xf32>
    %41 = vector.shape_cast %40 : vector<2x1x1x128xf32> to vector<2x1x128xf32>
    %c1_41 = arith.constant 1 : index
    %c2_42 = arith.constant 2 : index
    %42 = memref.load %arg2[%c1_41, %c2_42] : memref<4x4xf32, #tpu.memory_space<smem>>
    %43 = vector.broadcast %42 : f32 to vector<2x1x128xf32>
    %44 = arith.mulf %41, %43 : vector<2x1x128xf32>
    %45 = arith.addf %39, %44 : vector<2x1x128xf32>
    %c0_43 = arith.constant 0 : index
    %c3_44 = arith.constant 3 : index
    %c0_45 = arith.constant 0 : index
    %c0_46 = arith.constant 0 : index
    %46 = vector.load %arg4[%c0_43, %c3_44, %c0_45, %c0_46] : memref<2x4x1x128xf32, #tpu.memory_space<vmem>>, vector<2x1x1x128xf32>
    %47 = vector.shape_cast %46 : vector<2x1x1x128xf32> to vector<2x1x128xf32>
    %c1_47 = arith.constant 1 : index
    %c3_48 = arith.constant 3 : index
    %48 = memref.load %arg2[%c1_47, %c3_48] : memref<4x4xf32, #tpu.memory_space<smem>>
    %49 = vector.broadcast %48 : f32 to vector<2x1x128xf32>
    %50 = arith.mulf %47, %49 : vector<2x1x128xf32>
    %51 = arith.addf %45, %50 : vector<2x1x128xf32>
    %c1_49 = arith.constant 1 : index
    %52 = memref.load %arg3[%c1_49] : memref<4xf32, #tpu.memory_space<smem>>
    %53 = vector.broadcast %52 : f32 to vector<2x1x128xf32>
    %54 = arith.addf %51, %53 : vector<2x1x128xf32>
    %c0_50 = arith.constant 0 : index
    %c1_51 = arith.constant 1 : index
    %c0_52 = arith.constant 0 : index
    %c0_53 = arith.constant 0 : index
    %55 = vector.load %arg5[%c0_50, %c1_51, %c0_52, %c0_53] : memref<2x4x1x128xf32, #tpu.memory_space<vmem>>, vector<2x1x1x128xf32>
    %56 = vector.shape_cast %55 : vector<2x1x1x128xf32> to vector<2x1x128xf32>
    %57 = vector.shape_cast %54 : vector<2x1x128xf32> to vector<2x1x1x128xf32>
    tpu.vector_store %arg5[%c0_50, %c1_51, %c0_52, %c0_53], %57 {strides = array<i32>} : memref<2x4x1x128xf32, #tpu.memory_space<vmem>>, vector<2x1x1x128xf32>,
    %c0_54 = arith.constant 0 : index
    %c0_55 = arith.constant 0 : index
    %c0_56 = arith.constant 0 : index
    %c0_57 = arith.constant 0 : index
    %58 = vector.load %arg4[%c0_54, %c0_55, %c0_56, %c0_57] : memref<2x4x1x128xf32, #tpu.memory_space<vmem>>, vector<2x1x1x128xf32>
    %59 = vector.shape_cast %58 : vector<2x1x1x128xf32> to vector<2x1x128xf32>
    %c2_58 = arith.constant 2 : index
    %c0_59 = arith.constant 0 : index
    %60 = memref.load %arg2[%c2_58, %c0_59] : memref<4x4xf32, #tpu.memory_space<smem>>
    %61 = vector.broadcast %60 : f32 to vector<2x1x128xf32>
    %62 = arith.mulf %59, %61 : vector<2x1x128xf32>
    %c0_60 = arith.constant 0 : index
    %c1_61 = arith.constant 1 : index
    %c0_62 = arith.constant 0 : index
    %c0_63 = arith.constant 0 : index
    %63 = vector.load %arg4[%c0_60, %c1_61, %c0_62, %c0_63] : memref<2x4x1x128xf32, #tpu.memory_space<vmem>>, vector<2x1x1x128xf32>
    %64 = vector.shape_cast %63 : vector<2x1x1x128xf32> to vector<2x1x128xf32>
    %c2_64 = arith.constant 2 : index
    %c1_65 = arith.constant 1 : index
    %65 = memref.load %arg2[%c2_64, %c1_65] : memref<4x4xf32, #tpu.memory_space<smem>>
    %66 = vector.broadcast %65 : f32 to vector<2x1x128xf32>
    %67 = arith.mulf %64, %66 : vector<2x1x128xf32>
    %68 = arith.addf %62, %67 : vector<2x1x128xf32>
    %c0_66 = arith.constant 0 : index
    %c2_67 = arith.constant 2 : index
    %c0_68 = arith.constant 0 : index
    %c0_69 = arith.constant 0 : index
    %69 = vector.load %arg4[%c0_66, %c2_67, %c0_68, %c0_69] : memref<2x4x1x128xf32, #tpu.memory_space<vmem>>, vector<2x1x1x128xf32>
    %70 = vector.shape_cast %69 : vector<2x1x1x128xf32> to vector<2x1x128xf32>
    %c2_70 = arith.constant 2 : index
    %c2_71 = arith.constant 2 : index
    %71 = memref.load %arg2[%c2_70, %c2_71] : memref<4x4xf32, #tpu.memory_space<smem>>
    %72 = vector.broadcast %71 : f32 to vector<2x1x128xf32>
    %73 = arith.mulf %70, %72 : vector<2x1x128xf32>
    %74 = arith.addf %68, %73 : vector<2x1x128xf32>
    %c0_72 = arith.constant 0 : index
    %c3_73 = arith.constant 3 : index
    %c0_74 = arith.constant 0 : index
    %c0_75 = arith.constant 0 : index
    %75 = vector.load %arg4[%c0_72, %c3_73, %c0_74, %c0_75] : memref<2x4x1x128xf32, #tpu.memory_space<vmem>>, vector<2x1x1x128xf32>
    %76 = vector.shape_cast %75 : vector<2x1x1x128xf32> to vector<2x1x128xf32>
    %c2_76 = arith.constant 2 : index
    %c3_77 = arith.constant 3 : index
    %77 = memref.load %arg2[%c2_76, %c3_77] : memref<4x4xf32, #tpu.memory_space<smem>>
    %78 = vector.broadcast %77 : f32 to vector<2x1x128xf32>
    %79 = arith.mulf %76, %78 : vector<2x1x128xf32>
    %80 = arith.addf %74, %79 : vector<2x1x128xf32>
    %c2_78 = arith.constant 2 : index
    %81 = memref.load %arg3[%c2_78] : memref<4xf32, #tpu.memory_space<smem>>
    %82 = vector.broadcast %81 : f32 to vector<2x1x128xf32>
    %83 = arith.addf %80, %82 : vector<2x1x128xf32>
    %c0_79 = arith.constant 0 : index
    %c2_80 = arith.constant 2 : index
    %c0_81 = arith.constant 0 : index
    %c0_82 = arith.constant 0 : index
    %84 = vector.load %arg5[%c0_79, %c2_80, %c0_81, %c0_82] : memref<2x4x1x128xf32, #tpu.memory_space<vmem>>, vector<2x1x1x128xf32>
    %85 = vector.shape_cast %84 : vector<2x1x1x128xf32> to vector<2x1x128xf32>
    %86 = vector.shape_cast %83 : vector<2x1x128xf32> to vector<2x1x1x128xf32>
    tpu.vector_store %arg5[%c0_79, %c2_80, %c0_81, %c0_82], %86 {strides = array<i32>} : memref<2x4x1x128xf32, #tpu.memory_space<vmem>>, vector<2x1x1x128xf32>,
    %c0_83 = arith.constant 0 : index
    %c0_84 = arith.constant 0 : index
    %c0_85 = arith.constant 0 : index
    %c0_86 = arith.constant 0 : index
    %87 = vector.load %arg4[%c0_83, %c0_84, %c0_85, %c0_86] : memref<2x4x1x128xf32, #tpu.memory_space<vmem>>, vector<2x1x1x128xf32>
    %88 = vector.shape_cast %87 : vector<2x1x1x128xf32> to vector<2x1x128xf32>
    %c3_87 = arith.constant 3 : index
    %c0_88 = arith.constant 0 : index
    %89 = memref.load %arg2[%c3_87, %c0_88] : memref<4x4xf32, #tpu.memory_space<smem>>
    %90 = vector.broadcast %89 : f32 to vector<2x1x128xf32>
    %91 = arith.mulf %88, %90 : vector<2x1x128xf32>
    %c0_89 = arith.constant 0 : index
    %c1_90 = arith.constant 1 : index
    %c0_91 = arith.constant 0 : index
    %c0_92 = arith.constant 0 : index
    %92 = vector.load %arg4[%c0_89, %c1_90, %c0_91, %c0_92] : memref<2x4x1x128xf32, #tpu.memory_space<vmem>>, vector<2x1x1x128xf32>
    %93 = vector.shape_cast %92 : vector<2x1x1x128xf32> to vector<2x1x128xf32>
    %c3_93 = arith.constant 3 : index
    %c1_94 = arith.constant 1 : index
    %94 = memref.load %arg2[%c3_93, %c1_94] : memref<4x4xf32, #tpu.memory_space<smem>>
    %95 = vector.broadcast %94 : f32 to vector<2x1x128xf32>
    %96 = arith.mulf %93, %95 : vector<2x1x128xf32>
    %97 = arith.addf %91, %96 : vector<2x1x128xf32>
    %c0_95 = arith.constant 0 : index
    %c2_96 = arith.constant 2 : index
    %c0_97 = arith.constant 0 : index
    %c0_98 = arith.constant 0 : index
    %98 = vector.load %arg4[%c0_95, %c2_96, %c0_97, %c0_98] : memref<2x4x1x128xf32, #tpu.memory_space<vmem>>, vector<2x1x1x128xf32>
    %99 = vector.shape_cast %98 : vector<2x1x1x128xf32> to vector<2x1x128xf32>
    %c3_99 = arith.constant 3 : index
    %c2_100 = arith.constant 2 : index
    %100 = memref.load %arg2[%c3_99, %c2_100] : memref<4x4xf32, #tpu.memory_space<smem>>
    %101 = vector.broadcast %100 : f32 to vector<2x1x128xf32>
    %102 = arith.mulf %99, %101 : vector<2x1x128xf32>
    %103 = arith.addf %97, %102 : vector<2x1x128xf32>
    %c0_101 = arith.constant 0 : index
    %c3_102 = arith.constant 3 : index
    %c0_103 = arith.constant 0 : index
    %c0_104 = arith.constant 0 : index
    %104 = vector.load %arg4[%c0_101, %c3_102, %c0_103, %c0_104] : memref<2x4x1x128xf32, #tpu.memory_space<vmem>>, vector<2x1x1x128xf32>
    %105 = vector.shape_cast %104 : vector<2x1x1x128xf32> to vector<2x1x128xf32>
    %c3_105 = arith.constant 3 : index
    %c3_106 = arith.constant 3 : index
    %106 = memref.load %arg2[%c3_105, %c3_106] : memref<4x4xf32, #tpu.memory_space<smem>>
    %107 = vector.broadcast %106 : f32 to vector<2x1x128xf32>
    %108 = arith.mulf %105, %107 : vector<2x1x128xf32>
    %109 = arith.addf %103, %108 : vector<2x1x128xf32>
    %c3_107 = arith.constant 3 : index
    %110 = memref.load %arg3[%c3_107] : memref<4xf32, #tpu.memory_space<smem>>
    %111 = vector.broadcast %110 : f32 to vector<2x1x128xf32>
    %112 = arith.addf %109, %111 : vector<2x1x128xf32>
    %c0_108 = arith.constant 0 : index
    %c3_109 = arith.constant 3 : index
    %c0_110 = arith.constant 0 : index
    %c0_111 = arith.constant 0 : index
    %113 = vector.load %arg5[%c0_108, %c3_109, %c0_110, %c0_111] : memref<2x4x1x128xf32, #tpu.memory_space<vmem>>, vector<2x1x1x128xf32>
    %114 = vector.shape_cast %113 : vector<2x1x1x128xf32> to vector<2x1x128xf32>
    %115 = vector.shape_cast %112 : vector<2x1x128xf32> to vector<2x1x1x128xf32>
    tpu.vector_store %arg5[%c0_108, %c3_109, %c0_110, %c0_111], %115 {strides = array<i32>} : memref<2x4x1x128xf32, #tpu.memory_space<vmem>>, vector<2x1x1x128xf32>,
    return
  }
  func.func @transform_0(%arg0: i32, %arg1: i32, %arg2: memref<4x4xf32, #tpu.memory_space<smem>>, %arg3: memref<4xf32, #tpu.memory_space<smem>>) -> (i32, i32, i32, i32) {
    %c0_i32 = arith.constant 0 : i32
    %c0_i32_0 = arith.constant 0 : i32
    %c0_i32_1 = arith.constant 0 : i32
    return %arg0, %c0_i32, %arg1, %c0_i32_0 : i32, i32, i32, i32
  }
  func.func @transform_1(%arg0: i32, %arg1: i32, %arg2: memref<4x4xf32, #tpu.memory_space<smem>>, %arg3: memref<4xf32, #tpu.memory_space<smem>>) -> (i32, i32, i32, i32) {
    %c0_i32 = arith.constant 0 : i32
    %c0_i32_0 = arith.constant 0 : i32
    %c0_i32_1 = arith.constant 0 : i32
    return %arg0, %c0_i32, %arg1, %c0_i32_0 : i32, i32, i32, i32
  }
}

</mosaic_0001>

<llo_original>
// kernel: tpu_custom_call.1
$region0: #{tpu_custom_call.1}
  #allocation0 [shape = 'u32[]', space=smem, size = 0x4, offset = 0x4, fixed_abs, tag = 'smem constant byte address 0x4 - core index']
  #allocation1 [shape = 'u32[144,128]{1,0:T(1,128)}', space=vmem, size = 0x12000, scoped, tag = 'internal scratch']
  #allocation2 [shape = 's32[1]{0}', space=sflag, size = 0x4, scoped, tag = 'scoped memory for tpu_custom_call.1']
  #allocation3 [shape = 'u8[2048]{0}', space=smem, size = 0x800, scoped, tag = 'prefetched SMEM operand 0']
  #allocation4 [shape = 'u8[512]{0}', space=smem, size = 0x200, scoped, tag = 'prefetched SMEM operand 1']
  %s0 = inlined_call_operand.hbm [shape: f32[4,4], index: 0, kind: input, shape index: {}]
  %s1 = inlined_call_operand.vmem [shape: f32[4], index: 1, kind: input, shape index: {}]
  %s2 = inlined_call_operand.hbm [shape: f32[2,4,1,128], index: 2, kind: input, shape index: {}]
  %s3 = inlined_call_operand.hbm [shape: f32[2,4,1,128], index: 3, kind: output, shape index: {}]
  %s4 = sld [smem:[#allocation0]]
  $region18: #{tpu_custom_call.1} parent=0
    _
  %s6 = ssub.s32 1, %s4
  %s7 = scalar_select 0, %s6, %s4
  %9 = dma.hbm_to_smem %s0, 64, [#allocation3], [#allocation2]
  %s10 = sshll.u32 %s1, 4
  %s11 = int_to_ptr.vmem [resolvable:$true] %s10
  %13 = dma.vmem_to_smem %s11, 16, [#allocation4], [#allocation2]
  %14 = dma.done [#allocation2], 80
  %15 = sfence
  $region1: #{tpu_custom_call.1} parent=0
    #allocation5 [shape = 'u8[4096]{0}', space=vmem, size = 0x1000, scoped, tag = 'input window, operand 2, single buffered']
    #allocation6 [shape = 's32[1]{0}', space=sflag, size = 0x4, scoped, tag = 'scoped memory for tpu_custom_call.1']
    #allocation7 [shape = 's32[1]{0}', space=sflag, size = 0x4, scoped, tag = 'scoped memory for tpu_custom_call.1']
    #allocation8 [shape = 'u8[4096]{0}', space=vmem, size = 0x1000, scoped, tag = 'output window, operand 0, single buffered']
    %16 = vsyncpa [#allocation6], 0
    %17 = vsyncpa [#allocation7], 0
    // Predicated region
    $region2: #{tpu_custom_call.1} parent=1 // pred_check
      _
    $region3: #{tpu_custom_call.1} parent=1 // pred_check_branch
      %19 = sbr.rel (0) target = $region5
    $region4: #{tpu_custom_call.1} parent=1 // pred_region
      %s21 = ssub.s32 128, 128
      %22 = vsyncadd [#allocation6], %s21
      %s23 = sshll.u32 [#allocation5], 4
      %s24 = int_to_ptr.vmem [resolvable:$true] %s23
      %29 = dma.hbm_to_vmem [thread:$0]  %s2, 128, %s24, [#allocation6], 16, 16, 1
    $region5: #{tpu_custom_call.1} parent=1 // pred_fallthru
      _
    // Predicated region
    $region6: #{tpu_custom_call.1} parent=1 // pred_check
      _
    $region7: #{tpu_custom_call.1} parent=1 // pred_check_branch
      %31 = sbr.rel (0) target = $region9
    $region8: #{tpu_custom_call.1} parent=1 // pred_region
      %32 = dma.done [#allocation6], 128
    $region9: #{tpu_custom_call.1} parent=1 // pred_fallthru
      _
    %v33 = vld [vmem:[#allocation5] sm:$0x1]
    %v34 = vld [vmem:[#allocation5 + $0x4] sm:$0x1]
    %s35 = sld [smem:[#allocation3]]
    %v36 = vstv %s35
    %v37 = vmul.f32 %v33, %v36
    %v38 = vmul.f32 %v34, %v36
    %s39 = scalar_lea.vmem [#allocation5], 1
    %v40 = vld [vmem:[%s39] sm:$0x1]
    %v41 = vld [vmem:[%s39 + $0x4] sm:$0x1]
    %s42 = sld [smem:[#allocation3 + $0x1]]
    %v43 = vstv %s42
    %v44 = vmul.f32 %v40, %v43
    %v45 = vmul.f32 %v41, %v43
    %v46 = vadd.f32 %v37, %v44
    %v47 = vadd.f32 %v38, %v45
    %s48 = scalar_lea.vmem [#allocation5], 2
    %v49 = vld [vmem:[%s48] sm:$0x1]
    %v50 = vld [vmem:[%s48 + $0x4] sm:$0x1]
    %s51 = sld [smem:[#allocation3 + $0x2]]
    %v52 = vstv %s51
    %v53 = vmul.f32 %v49, %v52
    %v54 = vmul.f32 %v50, %v52
    %v55 = vadd.f32 %v46, %v53
    %v56 = vadd.f32 %v47, %v54
    %s57 = scalar_lea.vmem [#allocation5], 3
    %v58 = vld [vmem:[%s57] sm:$0x1]
    %v59 = vld [vmem:[%s57 + $0x4] sm:$0x1]
    %s60 = sld [smem:[#allocation3 + $0x3]]
    %v61 = vstv %s60
    %v62 = vmul.f32 %v58, %v61
    %v63 = vmul.f32 %v59, %v61
    %v64 = vadd.f32 %v55, %v62
    %v65 = vadd.f32 %v56, %v63
    %s66 = sld [smem:[#allocation4]]
    %v67 = vstv %s66
    %v68 = vadd.f32 %v64, %v67
    %v69 = vadd.f32 %v65, %v67
    %70 = vst [vmem:[#allocation8] sm:$0x1] %v68
    %71 = vst [vmem:[#allocation8 + $0x4] sm:$0x1] %v69
    %v72 = vld [vmem:[#allocation5] sm:$0x1]
    %v73 = vld [vmem:[#allocation5 + $0x4] sm:$0x1]
    %s74 = sld [smem:[#allocation3 + $0x80]]
    %v75 = vstv %s74
    %v76 = vmul.f32 %v72, %v75
    %v77 = vmul.f32 %v73, %v75
    %v78 = vld [vmem:[%s39] sm:$0x1]
    %v79 = vld [vmem:[%s39 + $0x4] sm:$0x1]
    %s80 = sld [smem:[#allocation3 + $0x81]]
    %v81 = vstv %s80
    %v82 = vmul.f32 %v78, %v81
    %v83 = vmul.f32 %v79, %v81
    %v84 = vadd.f32 %v76, %v82
    %v85 = vadd.f32 %v77, %v83
    %v86 = vld [vmem:[%s48] sm:$0x1]
    %v87 = vld [vmem:[%s48 + $0x4] sm:$0x1]
    %s88 = sld [smem:[#allocation3 + $0x82]]
    %v89 = vstv %s88
    %v90 = vmul.f32 %v86, %v89
    %v91 = vmul.f32 %v87, %v89
    %v92 = vadd.f32 %v84, %v90
    %v93 = vadd.f32 %v85, %v91
    %v94 = vld [vmem:[%s57] sm:$0x1]
    %v95 = vld [vmem:[%s57 + $0x4] sm:$0x1]
    %s96 = sld [smem:[#allocation3 + $0x83]]
    %v97 = vstv %s96
    %v98 = vmul.f32 %v94, %v97
    %v99 = vmul.f32 %v95, %v97
    %v100 = vadd.f32 %v92, %v98
    %v101 = vadd.f32 %v93, %v99
    %s102 = sld [smem:[#allocation4 + $0x1]]
    %v103 = vstv %s102
    %v104 = vadd.f32 %v100, %v103
    %v105 = vadd.f32 %v101, %v103
    %s106 = scalar_lea.vmem [#allocation8], 1
    %107 = vst [vmem:[%s106] sm:$0x1] %v104
    %108 = vst [vmem:[%s106 + $0x4] sm:$0x1] %v105
    %v109 = vld [vmem:[#allocation5] sm:$0x1]
    %v110 = vld [vmem:[#allocation5 + $0x4] sm:$0x1]
    %s111 = sld [smem:[#allocation3 + $0x100]]
    %v112 = vstv %s111
    %v113 = vmul.f32 %v109, %v112
    %v114 = vmul.f32 %v110, %v112
    %v115 = vld [vmem:[%s39] sm:$0x1]
    %v116 = vld [vmem:[%s39 + $0x4] sm:$0x1]
    %s117 = sld [smem:[#allocation3 + $0x101]]
    %v118 = vstv %s117
    %v119 = vmul.f32 %v115, %v118
    %v120 = vmul.f32 %v116, %v118
    %v121 = vadd.f32 %v113, %v119
    %v122 = vadd.f32 %v114, %v120
    %v123 = vld [vmem:[%s48] sm:$0x1]
    %v124 = vld [vmem:[%s48 + $0x4] sm:$0x1]
    %s125 = sld [smem:[#allocation3 + $0x102]]
    %v126 = vstv %s125
    %v127 = vmul.f32 %v123, %v126
    %v128 = vmul.f32 %v124, %v126
    %v129 = vadd.f32 %v121, %v127
    %v130 = vadd.f32 %v122, %v128
    %v131 = vld [vmem:[%s57] sm:$0x1]
    %v132 = vld [vmem:[%s57 + $0x4] sm:$0x1]
    %s133 = sld [smem:[#allocation3 + $0x103]]
    %v134 = vstv %s133
    %v135 = vmul.f32 %v131, %v134
    %v136 = vmul.f32 %v132, %v134
    %v137 = vadd.f32 %v129, %v135
    %v138 = vadd.f32 %v130, %v136
    %s139 = sld [smem:[#allocation4 + $0x2]]
    %v140 = vstv %s139
    %v141 = vadd.f32 %v137, %v140
    %v142 = vadd.f32 %v138, %v140
    %s143 = scalar_lea.vmem [#allocation8], 2
    %144 = vst [vmem:[%s143] sm:$0x1] %v141
    %145 = vst [vmem:[%s143 + $0x4] sm:$0x1] %v142
    %v146 = vld [vmem:[#allocation5] sm:$0x1]
    %v147 = vld [vmem:[#allocation5 + $0x4] sm:$0x1]
    %s148 = sld [smem:[#allocation3 + $0x180]]
    %v149 = vstv %s148
    %v150 = vmul.f32 %v146, %v149
    %v151 = vmul.f32 %v147, %v149
    %v152 = vld [vmem:[%s39] sm:$0x1]
    %v153 = vld [vmem:[%s39 + $0x4] sm:$0x1]
    %s154 = sld [smem:[#allocation3 + $0x181]]
    %v155 = vstv %s154
    %v156 = vmul.f32 %v152, %v155
    %v157 = vmul.f32 %v153, %v155
    %v158 = vadd.f32 %v150, %v156
    %v159 = vadd.f32 %v151, %v157
    %v160 = vld [vmem:[%s48] sm:$0x1]
    %v161 = vld [vmem:[%s48 + $0x4] sm:$0x1]
    %s162 = sld [smem:[#allocation3 + $0x182]]
    %v163 = vstv %s162
    %v164 = vmul.f32 %v160, %v163
    %v165 = vmul.f32 %v161, %v163
    %v166 = vadd.f32 %v158, %v164
    %v167 = vadd.f32 %v159, %v165
    %v168 = vld [vmem:[%s57] sm:$0x1]
    %v169 = vld [vmem:[%s57 + $0x4] sm:$0x1]
    %s170 = sld [smem:[#allocation3 + $0x183]]
    %v171 = vstv %s170
    %v172 = vmul.f32 %v168, %v171
    %v173 = vmul.f32 %v169, %v171
    %v174 = vadd.f32 %v166, %v172
    %v175 = vadd.f32 %v167, %v173
    %s176 = sld [smem:[#allocation4 + $0x3]]
    %v177 = vstv %s176
    %v178 = vadd.f32 %v174, %v177
    %v179 = vadd.f32 %v175, %v177
    %s180 = scalar_lea.vmem [#allocation8], 3
    %181 = vst [vmem:[%s180] sm:$0x1] %v178
    %182 = vst [vmem:[%s180 + $0x4] sm:$0x1] %v179
    // Predicated region
    $region10: #{tpu_custom_call.1} parent=1 // pred_check
      _
    $region11: #{tpu_custom_call.1} parent=1 // pred_check_branch
      %184 = sbr.rel (0) target = $region13
    $region12: #{tpu_custom_call.1} parent=1 // pred_region
      %s186 = ssub.s32 128, 128
      %187 = vsyncadd [#allocation7], %s186
      %s188 = sshll.u32 [#allocation8], 4
      %s189 = int_to_ptr.vmem [resolvable:$true] %s188
      %194 = dma.vmem_to_hbm [thread:$0]  %s189, 128, %s3, [#allocation7], 16, 16, 1
    $region13: #{tpu_custom_call.1} parent=1 // pred_fallthru
      _
    // Predicated region
    $region14: #{tpu_custom_call.1} parent=1 // pred_check
      _
    $region15: #{tpu_custom_call.1} parent=1 // pred_check_branch
      %196 = sbr.rel (0) target = $region17
    $region16: #{tpu_custom_call.1} parent=1 // pred_region
      %197 = dma.done [#allocation7], 128
    $region17: #{tpu_custom_call.1} parent=1 // pred_fallthru
      _
    %198 = vsyncpa [#allocation6], 1
    %199 = vsyncpa [#allocation7], 1

</llo_original>
